<compile_context>
chip_gen: v5e
topology: v5e:2x2
jax: 0.10.0
libtpu: 0.0.40
codegen_flags: <defaults>
</compile_context>

<pallas_src>
import functools

import jax
import jax.numpy as jnp
from jax.experimental import pallas as pl
from jax.experimental.pallas import tpu as pltpu

_MIB = 1 << 20


# ---------------------------------------------------------------------------
# In-kernel math helpers (GELU runs in f32 regardless of compute dtype)
# ---------------------------------------------------------------------------
def _erf(x):
    # Abramowitz & Stegun 7.1.26 rational approximation (|err| ~ 1.5e-7; close
    # to, but not bit-exact with, torch's erf).  exp() runs on the EUP; the
    # divide uses the EUP approx reciprocal refined with one Newton step.
    p = 0.3275911
    a1, a2, a3, a4, a5 = (0.254829592, -0.284496736, 1.421413741,
                          -1.453152027, 1.061405429)
    sign = jnp.where(x < 0.0, -1.0, 1.0)
    z = jnp.abs(x)
    d = 1.0 + p * z
    r = pl.reciprocal(d, approx=True)
    t = r * (2.0 - d * r)                       # Newton refinement of 1/d
    poly = t * (a1 + t * (a2 + t * (a3 + t * (a4 + t * a5))))
    return sign * (1.0 - poly * jnp.exp(-z * z))


def _gelu(x):
    # erf-based GELU, matching torch.nn.functional.gelu default.
    return 0.5 * x * (1.0 + _erf(x * 0.7071067811865476))


# ---------------------------------------------------------------------------
# Kernel 1: fully-resident weights, grid = (batch_tiles,)
# ---------------------------------------------------------------------------
def _resident_kernel(*refs, num_layers, use_act):
    if num_layers > 0:
        (x_ref, w_in_ref, b_in_ref, w_hid_ref, b_hid_ref,
         w_out_ref, b_out_ref, o_ref) = refs
    else:
        x_ref, w_in_ref, b_in_ref, w_out_ref, b_out_ref, o_ref = refs
        w_hid_ref = b_hid_ref = None

    cdtype = x_ref.dtype                        # compute dtype (bf16/f32)

    h32 = jnp.dot(x_ref[...], w_in_ref[...],
                  preferred_element_type=jnp.float32) + b_in_ref[...]
    h = _gelu(h32).astype(cdtype)

    def layer(i, h):
        # Dropout(p=0.9) is identity in eval mode.
        acc = jnp.dot(h, w_hid_ref[i],
                      preferred_element_type=jnp.float32) + b_hid_ref[i]
        return _gelu(acc).astype(cdtype)

    if num_layers > 0:
        if num_layers <= 8:                     # static unroll for short L
            for i in range(num_layers):
                h = layer(i, h)
        else:                                   # bounded live ranges for long L
            h = jax.lax.fori_loop(0, num_layers, layer, h)

    out = jnp.dot(h, w_out_ref[...],
                  preferred_element_type=jnp.float32) + b_out_ref[...]
    if use_act:
        out = _gelu(out)
    o_ref[...] = out.astype(o_ref.dtype)


# ---------------------------------------------------------------------------
# Kernel 2: streamed hidden layers, grid = (batch_tiles, layer_blocks)
# ---------------------------------------------------------------------------
def _streamed_kernel(x_ref, w_in_ref, b_in_ref, w_hid_ref, b_hid_ref,
                     w_out_ref, b_out_ref, o_ref, h_ref, *,
                     layers_per_step, use_act):
    step = pl.program_id(1)
    last = pl.num_programs(1) - 1

    # linear_in + gelu once per batch tile (first layer step).
    @pl.when(step == 0)
    def _():
        h32 = jnp.dot(x_ref[...], w_in_ref[...],
                      preferred_element_type=jnp.float32) + b_in_ref[...]
        h_ref[...] = _gelu(h32).astype(h_ref.dtype)

    # LB hidden layers per grid step (weights streamed / double-buffered).
    for j in range(layers_per_step):            # static unroll over the block
        h32 = jnp.dot(h_ref[...], w_hid_ref[j],
                      preferred_element_type=jnp.float32) + b_hid_ref[j]
        h_ref[...] = _gelu(h32).astype(h_ref.dtype)

    # linear_out (+ optional gelu) once per batch tile (last layer step).
    @pl.when(step == last)
    def _():
        out = jnp.dot(h_ref[...], w_out_ref[...],
                      preferred_element_type=jnp.float32) + b_out_ref[...]
        if use_act:
            out = _gelu(out)
        o_ref[...] = out.astype(o_ref.dtype)


# ---------------------------------------------------------------------------
# Wrapper: padding / casting to hardware-friendly shapes + pallas_call
# ---------------------------------------------------------------------------
def _round_up(n, m):
    return (n + m - 1) // m * m


def _pad2(a, rows, cols):
    return jnp.pad(a, ((0, rows - a.shape[0]), (0, cols - a.shape[1])))


def _vmem_capacity_bytes():
    try:
        cap = getattr(pltpu.get_tpu_info(), "vmem_capacity_bytes", None)
        if cap:
            return int(cap)
    except Exception:
        pass
    return 64 * _MIB                            # conservative (v7x per-TC)


def mlp_forward(x, params, *, num_layers, use_act=True,
                compute_dtype=jnp.bfloat16, path="auto"):
    """Forward pass of MLP_net_variable (eval mode: dropout = identity)."""
    batch, in_dim = x.shape
    hidden_dim = params["w_in"].shape[1]
    out_dim = params["w_out"].shape[1]
    out_dtype = x.dtype
    cb = jnp.dtype(compute_dtype).itemsize
    ob = jnp.dtype(out_dtype).itemsize

    # ---- pad lane dims to x128; pick the batch tile -------------------------
    din_p = _round_up(in_dim, 128)
    h_p = _round_up(hidden_dim, 128)
    dout_p = _round_up(out_dim, 128)

    row_align = 8 if cb >= 4 else 16            # sublane packing for bf16
    b8 = _round_up(batch, row_align)
    if b8 <= row_align:
        tb = b8
    else:
        # Up to 256 rows (feeds the 256-wide MXU on v6e/v7x) but keep >= 2
        # tiles so both v7x TensorCores get work on the "parallel" axis.
        tb = min(256, _round_up(b8 // 2, row_align))
    b_p = _round_up(b8, tb)
    n_btiles = b_p // tb

    # ---- padded / casted operands (gelu(0)=0 keeps zero padding exact) ------
    x_p = jnp.pad(x, ((0, b_p - batch),
                      (0, din_p - in_dim))).astype(compute_dtype)
    w_in = _pad2(params["w_in"], din_p, h_p).astype(compute_dtype)
    b_in = _pad2(params["b_in"], 1, h_p).astype(jnp.float32)
    w_out = _pad2(params["w_out"], h_p, dout_p).astype(compute_dtype)
    b_out = _pad2(params["b_out"], 1, dout_p).astype(jnp.float32)
    if num_layers > 0:
        w_hid = jnp.pad(params["w_hid"],
                        ((0, 0), (0, h_p - hidden_dim),
                         (0, h_p - hidden_dim))).astype(compute_dtype)
        b_hid = jnp.pad(params["b_hid"],
                        ((0, 0), (0, 0),
                         (0, h_p - hidden_dim))).astype(jnp.float32)

    # ---- static path choice from VMEM footprint -----------------------------
    cap = _vmem_capacity_bytes()
    usable = cap - 16 * _MIB

    io_est = 2 * (tb * din_p * cb + tb * dout_p * ob)          # x + out blocks
    inout_w = 2 * ((din_p * h_p + h_p * dout_p) * cb + (h_p + dout_p) * 4)
    temps = 4 * tb * h_p * 4
    resident_est = (io_est + inout_w + temps
                    + 2 * num_layers * (h_p * h_p * cb + h_p * 4))

    if path == "resident":
        use_resident = True
    elif path == "streamed":
        use_resident = num_layers == 0          # streaming needs >= 1 layer
    else:                                       # "auto"
        use_resident = num_layers == 0 or resident_est <= int(0.8 * usable)

    if use_resident:
        kernel = functools.partial(_resident_kernel, num_layers=num_layers,
                                   use_act=use_act)
        in_specs = [
            pl.BlockSpec((tb, din_p), lambda b: (b, 0)),          # x
            pl.BlockSpec((din_p, h_p), lambda b: (0, 0)),         # w_in
            pl.BlockSpec((1, h_p), lambda b: (0, 0)),             # b_in
        ]
        operands = [x_p, w_in, b_in]
        if num_layers > 0:
            in_specs += [
                pl.BlockSpec((num_layers, h_p, h_p), lambda b: (0, 0, 0)),
                pl.BlockSpec((num_layers, 1, h_p), lambda b: (0, 0, 0)),
            ]
            operands += [w_hid, b_hid]
        in_specs += [
            pl.BlockSpec((h_p, dout_p), lambda b: (0, 0)),        # w_out
            pl.BlockSpec((1, dout_p), lambda b: (0, 0)),          # b_out
        ]
        operands += [w_out, b_out]

        vmem_limit = int(min(max(int(1.25 * resident_est), 32 * _MIB),
                             cap - 12 * _MIB))
        out = pl.pallas_call(
            kernel,
            out_shape=jax.ShapeDtypeStruct((b_p, dout_p), out_dtype),
            grid_spec=pltpu.PrefetchScalarGridSpec(
                num_scalar_prefetch=0,
                grid=(n_btiles,),
                in_specs=in_specs,
                out_specs=pl.BlockSpec((tb, dout_p), lambda b: (b, 0)),
            ),
            compiler_params=pltpu.CompilerParams(
                dimension_semantics=("parallel",),
                vmem_limit_bytes=vmem_limit,
            ),
        )(*operands)
    else:
        # Largest layer block LB that divides num_layers and fits VMEM.
        fixed = io_est + inout_w + temps + tb * h_p * cb
        lb = 1
        for cand in (8, 4, 2, 1):
            if (num_layers % cand == 0 and
                    fixed + 2 * cand * (h_p * h_p * cb + h_p * 4)
                    <= int(0.9 * usable)):
                lb = cand
                break
        streamed_est = fixed + 2 * lb * (h_p * h_p * cb + h_p * 4)
        vmem_limit = int(min(max(int(1.25 * streamed_est), 32 * _MIB),
                             cap - 12 * _MIB))

        kernel = functools.partial(_streamed_kernel, layers_per_step=lb,
                                   use_act=use_act)
        out = pl.pallas_call(
            kernel,
            out_shape=jax.ShapeDtypeStruct((b_p, dout_p), out_dtype),
            grid_spec=pltpu.PrefetchScalarGridSpec(
                num_scalar_prefetch=0,
                grid=(n_btiles, num_layers // lb),
                in_specs=[
                    pl.BlockSpec((tb, din_p), lambda b, l: (b, 0)),       # x
                    pl.BlockSpec((din_p, h_p), lambda b, l: (0, 0)),      # w_in
                    pl.BlockSpec((1, h_p), lambda b, l: (0, 0)),          # b_in
                    pl.BlockSpec((lb, h_p, h_p), lambda b, l: (l, 0, 0)), # w_hid
                    pl.BlockSpec((lb, 1, h_p), lambda b, l: (l, 0, 0)),   # b_hid
                    pl.BlockSpec((h_p, dout_p), lambda b, l: (0, 0)),     # w_out
                    pl.BlockSpec((1, dout_p), lambda b, l: (0, 0)),       # b_out
                ],
                out_specs=pl.BlockSpec((tb, dout_p), lambda b, l: (b, 0)),
                scratch_shapes=[pltpu.VMEM((tb, h_p), compute_dtype)],
            ),
            compiler_params=pltpu.CompilerParams(
                dimension_semantics=("parallel", "arbitrary"),
                vmem_limit_bytes=vmem_limit,
            ),
        )(x_p, w_in, b_in, w_hid, b_hid, w_out, b_out)

    return out[:batch, :out_dim]


# ---------------------------------------------------------------------------
# Deterministic parameter init (matches shapes/initializers in __init__)
# ---------------------------------------------------------------------------
def init_params(key, in_dim, out_dim, hidden_dim, num_layers,
                dtype=jnp.float32):
    # Weights stored pre-transposed as [fan_in, fan_out].
    def xavier_normal(k, fan_in, fan_out):
        std = (2.0 / (fan_in + fan_out)) ** 0.5
        return (std * jax.random.normal(k, (fan_in, fan_out))).astype(dtype)

    def bias_init(k, fan_in, fan_out):
        bound = 1.0 / (fan_in ** 0.5)           # torch.nn.Linear default bias
        return jax.random.uniform(k, (1, fan_out), minval=-bound,
                                  maxval=bound).astype(dtype)

    keys = jax.random.split(key, 2 * (num_layers + 2))
    params = {
        "w_in": xavier_normal(keys[0], in_dim, hidden_dim),
        "b_in": bias_init(keys[1], in_dim, hidden_dim),
        "w_out": xavier_normal(keys[2], hidden_dim, out_dim),
        "b_out": bias_init(keys[3], hidden_dim, out_dim),
    }
    if num_layers > 0:
        w_hid = [xavier_normal(keys[4 + 2 * i], hidden_dim, hidden_dim)
                 for i in range(num_layers)]
        b_hid = [bias_init(keys[5 + 2 * i], hidden_dim, hidden_dim)
                 for i in range(num_layers)]
        params["w_hid"] = jnp.stack(w_hid, axis=0)        # [L, H, H]
        params["b_hid"] = jnp.stack(b_hid, axis=0)        # [L, 1, H]
    return params


# ---------------------------------------------------------------------------
if __name__ == "__main__":
    in_dim, out_dim, hidden_dim, num_layers = 16, 8, 32, 3
    batch = 4
    use_act = True

    key = jax.random.PRNGKey(0)
    k_x, k_p, k_p0 = jax.random.split(key, 3)
    x = jax.random.normal(k_x, (batch, in_dim), dtype=jnp.float32)
    params = init_params(k_p, in_dim, out_dim, hidden_dim, num_layers)

    # Pure-JAX reference (same math outside Pallas, f32, exact erf GELU).
    def ref(x, p, nl, ua):
        h = jax.nn.gelu(x @ p["w_in"] + p["b_in"], approximate=False)
        for i in range(nl):
            h = jax.nn.gelu(h @ p["w_hid"][i] + p["b_hid"][i],
                            approximate=False)
        o = h @ p["w_out"] + p["b_out"]
        if ua:
            o = jax.nn.gelu(o, approximate=False)
        return o

    expect = ref(x, params, num_layers, use_act)

    # 1) default bf16 compute, auto-selected (resident) path
    out_bf16 = jax.block_until_ready(
        mlp_forward(x, params, num_layers=num_layers, use_act=use_act))
    assert out_bf16.shape == (batch, out_dim)
    assert jnp.allclose(out_bf16, expect, atol=6e-2, rtol=6e-2), \
        "bf16 resident mismatch"

    # 2) f32 compute, resident path (tight check of the kernel math)
    out_f32 = jax.block_until_ready(
        mlp_forward(x, params, num_layers=num_layers, use_act=use_act,
                    compute_dtype=jnp.float32))
    assert jnp.allclose(out_f32, expect, atol=1e-4), "f32 resident mismatch"

    # 3) f32 compute, forced layer-streamed path (large-model code path)
    out_str = jax.block_until_ready(
        mlp_forward(x, params, num_layers=num_layers, use_act=use_act,
                    compute_dtype=jnp.float32, path="streamed"))
    assert jnp.allclose(out_str, expect, atol=1e-4), "f32 streamed mismatch"

    # 4) num_layers == 0 variant (no hidden-layer weights shipped at all)
    params0 = init_params(k_p0, in_dim, out_dim, hidden_dim, 0)
    out0 = jax.block_until_ready(
        mlp_forward(x, params0, num_layers=0, use_act=use_act,
                    compute_dtype=jnp.float32))
    assert jnp.allclose(out0, ref(x, params0, 0, use_act), atol=1e-4), \
        "num_layers=0 mismatch"

    print("KERNEL_OK")
</pallas_src>

<mosaic_0001>
module attributes {stable_mosaic.version = 11 : i64} {
  func.func @_resident_kernel(%arg0: i32, %arg1: memref<16x128xbf16, #tpu.memory_space<vmem>>, %arg2: memref<128x128xbf16, #tpu.memory_space<vmem>>, %arg3: memref<1x128xf32, #tpu.memory_space<vmem>>, %arg4: memref<3x128x128xbf16, #tpu.memory_space<vmem>>, %arg5: memref<3x1x128xf32, #tpu.memory_space<vmem>>, %arg6: memref<128x128xbf16, #tpu.memory_space<vmem>>, %arg7: memref<1x128xf32, #tpu.memory_space<vmem>>, %arg8: memref<16x128xf32, #tpu.memory_space<vmem>>) attributes {dimension_semantics = [#tpu.dimension_semantics<parallel>], iteration_bounds = array<i64: 1>, scalar_prefetch = 0 : i64, scratch_operands = 0 : i64, tpu.core_type = #tpu.core_type<tc>, window_params = [{transform_indices = @transform_0, window_bounds = array<i64: 16, 128>}, {pipeline_mode = #tpu.pipeline_mode<synchronous>, transform_indices = @transform_1, window_bounds = array<i64: 128, 128>}, {pipeline_mode = #tpu.pipeline_mode<synchronous>, transform_indices = @transform_2, window_bounds = array<i64: 1, 128>}, {pipeline_mode = #tpu.pipeline_mode<synchronous>, transform_indices = @transform_3, window_bounds = array<i64: 3, 128, 128>}, {pipeline_mode = #tpu.pipeline_mode<synchronous>, transform_indices = @transform_4, window_bounds = array<i64: 3, 1, 128>}, {pipeline_mode = #tpu.pipeline_mode<synchronous>, transform_indices = @transform_5, window_bounds = array<i64: 128, 128>}, {pipeline_mode = #tpu.pipeline_mode<synchronous>, transform_indices = @transform_6, window_bounds = array<i64: 1, 128>}, {transform_indices = @transform_7, window_bounds = array<i64: 16, 128>}]} {
    %c0 = arith.constant 0 : index
    %c0_0 = arith.constant 0 : index
    %0 = vector.load %arg1[%c0, %c0_0] : memref<16x128xbf16, #tpu.memory_space<vmem>>, vector<16x128xbf16>
    %c0_1 = arith.constant 0 : index
    %c0_2 = arith.constant 0 : index
    %1 = vector.load %arg2[%c0_1, %c0_2] : memref<128x128xbf16, #tpu.memory_space<vmem>>, vector<128x128xbf16>
    %cst = arith.constant dense<0.000000e+00> : vector<16x128xf32>
    %2 = tpu.matmul %0, %1, %cst {dimension_numbers = #tpu.dot_dimension_numbers<[1], [0], [0], [1], [0, 0, 1, 1], [], []>} : vector<16x128xbf16>, vector<128x128xbf16>, vector<16x128xf32> -> vector<16x128xf32>
    %c0_3 = arith.constant 0 : index
    %c0_4 = arith.constant 0 : index
    %3 = vector.load %arg3[%c0_3, %c0_4] : memref<1x128xf32, #tpu.memory_space<vmem>>, vector<1x128xf32>
    %4 = vector.broadcast %3 : vector<1x128xf32> to vector<16x128xf32>
    %5 = arith.addf %2, %4 : vector<16x128xf32>
    %cst_5 = arith.constant 5.000000e-01 : f32
    %6 = vector.broadcast %cst_5 : f32 to vector<16x128xf32>
    %7 = arith.mulf %6, %5 : vector<16x128xf32>
    %cst_6 = arith.constant 0.707106769 : f32
    %8 = vector.broadcast %cst_6 : f32 to vector<16x128xf32>
    %9 = arith.mulf %5, %8 : vector<16x128xf32>
    %cst_7 = arith.constant 0.000000e+00 : f32
    %10 = vector.broadcast %cst_7 : f32 to vector<16x128xf32>
    %11 = arith.cmpf olt, %9, %10 : vector<16x128xf32>
    %cst_8 = arith.constant -1.000000e+00 : f32
    %cst_9 = arith.constant 1.000000e+00 : f32
    %12 = vector.broadcast %cst_8 : f32 to vector<16x128xf32>
    %13 = vector.broadcast %cst_9 : f32 to vector<16x128xf32>
    %14 = arith.select %11, %12, %13 : vector<16x128xi1>, vector<16x128xf32>
    %15 = math.absf %9 : vector<16x128xf32>
    %cst_10 = arith.constant 0.327591091 : f32
    %16 = vector.broadcast %cst_10 : f32 to vector<16x128xf32>
    %17 = arith.mulf %16, %15 : vector<16x128xf32>
    %cst_11 = arith.constant 1.000000e+00 : f32
    %18 = vector.broadcast %cst_11 : f32 to vector<16x128xf32>
    %19 = arith.addf %18, %17 : vector<16x128xf32>
    %20 = tpu.reciprocal %19 {approx = true} : vector<16x128xf32> -> vector<16x128xf32>
    %21 = arith.mulf %19, %20 : vector<16x128xf32>
    %cst_12 = arith.constant 2.000000e+00 : f32
    %22 = vector.broadcast %cst_12 : f32 to vector<16x128xf32>
    %23 = arith.subf %22, %21 : vector<16x128xf32>
    %24 = arith.mulf %20, %23 : vector<16x128xf32>
    %cst_13 = arith.constant 1.06140542 : f32
    %25 = vector.broadcast %cst_13 : f32 to vector<16x128xf32>
    %26 = arith.mulf %24, %25 : vector<16x128xf32>
    %cst_14 = arith.constant -1.45315206 : f32
    %27 = vector.broadcast %cst_14 : f32 to vector<16x128xf32>
    %28 = arith.addf %27, %26 : vector<16x128xf32>
    %29 = arith.mulf %24, %28 : vector<16x128xf32>
    %cst_15 = arith.constant 1.42141378 : f32
    %30 = vector.broadcast %cst_15 : f32 to vector<16x128xf32>
    %31 = arith.addf %30, %29 : vector<16x128xf32>
    %32 = arith.mulf %24, %31 : vector<16x128xf32>
    %cst_16 = arith.constant -0.284496725 : f32
    %33 = vector.broadcast %cst_16 : f32 to vector<16x128xf32>
    %34 = arith.addf %33, %32 : vector<16x128xf32>
    %35 = arith.mulf %24, %34 : vector<16x128xf32>
    %cst_17 = arith.constant 0.254829586 : f32
    %36 = vector.broadcast %cst_17 : f32 to vector<16x128xf32>
    %37 = arith.addf %36, %35 : vector<16x128xf32>
    %38 = arith.mulf %24, %37 : vector<16x128xf32>
    %cst_18 = arith.constant 0.000000e+00 : f32
    %39 = vector.broadcast %cst_18 : f32 to vector<16x128xf32>
    %40 = arith.subf %39, %15 : vector<16x128xf32>
    %41 = arith.mulf %40, %15 : vector<16x128xf32>
    %42 = math.exp %41 : vector<16x128xf32>
    %43 = arith.mulf %38, %42 : vector<16x128xf32>
    %cst_19 = arith.constant 1.000000e+00 : f32
    %44 = vector.broadcast %cst_19 : f32 to vector<16x128xf32>
    %45 = arith.subf %44, %43 : vector<16x128xf32>
    %46 = arith.mulf %14, %45 : vector<16x128xf32>
    %cst_20 = arith.constant 1.000000e+00 : f32
    %47 = vector.broadcast %cst_20 : f32 to vector<16x128xf32>
    %48 = arith.addf %47, %46 : vector<16x128xf32>
    %49 = arith.mulf %7, %48 : vector<16x128xf32>
    %50 = arith.truncf %49 : vector<16x128xf32> to vector<16x128xbf16>
    %c0_21 = arith.constant 0 : index
    %c0_22 = arith.constant 0 : index
    %c0_23 = arith.constant 0 : index
    %51 = vector.load %arg4[%c0_21, %c0_22, %c0_23] : memref<3x128x128xbf16, #tpu.memory_space<vmem>>, vector<1x128x128xbf16>
    %52 = vector.shape_cast %51 : vector<1x128x128xbf16> to vector<128x128xbf16>
    %cst_24 = arith.constant dense<0.000000e+00> : vector<16x128xf32>
    %53 = tpu.matmul %50, %52, %cst_24 {dimension_numbers = #tpu.dot_dimension_numbers<[1], [0], [0], [1], [0, 0, 1, 1], [], []>} : vector<16x128xbf16>, vector<128x128xbf16>, vector<16x128xf32> -> vector<16x128xf32>
    %c0_25 = arith.constant 0 : index
    %c0_26 = arith.constant 0 : index
    %c0_27 = arith.constant 0 : index
    %54 = vector.load %arg5[%c0_25, %c0_26, %c0_27] : memref<3x1x128xf32, #tpu.memory_space<vmem>>, vector<1x1x128xf32>
    %55 = vector.shape_cast %54 : vector<1x1x128xf32> to vector<1x128xf32>
    %56 = vector.broadcast %55 : vector<1x128xf32> to vector<16x128xf32>
    %57 = arith.addf %53, %56 : vector<16x128xf32>
    %cst_28 = arith.constant 5.000000e-01 : f32
    %58 = vector.broadcast %cst_28 : f32 to vector<16x128xf32>
    %59 = arith.mulf %58, %57 : vector<16x128xf32>
    %cst_29 = arith.constant 0.707106769 : f32
    %60 = vector.broadcast %cst_29 : f32 to vector<16x128xf32>
    %61 = arith.mulf %57, %60 : vector<16x128xf32>
    %cst_30 = arith.constant 0.000000e+00 : f32
    %62 = vector.broadcast %cst_30 : f32 to vector<16x128xf32>
    %63 = arith.cmpf olt, %61, %62 : vector<16x128xf32>
    %cst_31 = arith.constant -1.000000e+00 : f32
    %cst_32 = arith.constant 1.000000e+00 : f32
    %64 = vector.broadcast %cst_31 : f32 to vector<16x128xf32>
    %65 = vector.broadcast %cst_32 : f32 to vector<16x128xf32>
    %66 = arith.select %63, %64, %65 : vector<16x128xi1>, vector<16x128xf32>
    %67 = math.absf %61 : vector<16x128xf32>
    %cst_33 = arith.constant 0.327591091 : f32
    %68 = vector.broadcast %cst_33 : f32 to vector<16x128xf32>
    %69 = arith.mulf %68, %67 : vector<16x128xf32>
    %cst_34 = arith.constant 1.000000e+00 : f32
    %70 = vector.broadcast %cst_34 : f32 to vector<16x128xf32>
    %71 = arith.addf %70, %69 : vector<16x128xf32>
    %72 = tpu.reciprocal %71 {approx = true} : vector<16x128xf32> -> vector<16x128xf32>
    %73 = arith.mulf %71, %72 : vector<16x128xf32>
    %cst_35 = arith.constant 2.000000e+00 : f32
    %74 = vector.broadcast %cst_35 : f32 to vector<16x128xf32>
    %75 = arith.subf %74, %73 : vector<16x128xf32>
    %76 = arith.mulf %72, %75 : vector<16x128xf32>
    %cst_36 = arith.constant 1.06140542 : f32
    %77 = vector.broadcast %cst_36 : f32 to vector<16x128xf32>
    %78 = arith.mulf %76, %77 : vector<16x128xf32>
    %cst_37 = arith.constant -1.45315206 : f32
    %79 = vector.broadcast %cst_37 : f32 to vector<16x128xf32>
    %80 = arith.addf %79, %78 : vector<16x128xf32>
    %81 = arith.mulf %76, %80 : vector<16x128xf32>
    %cst_38 = arith.constant 1.42141378 : f32
    %82 = vector.broadcast %cst_38 : f32 to vector<16x128xf32>
    %83 = arith.addf %82, %81 : vector<16x128xf32>
    %84 = arith.mulf %76, %83 : vector<16x128xf32>
    %cst_39 = arith.constant -0.284496725 : f32
    %85 = vector.broadcast %cst_39 : f32 to vector<16x128xf32>
    %86 = arith.addf %85, %84 : vector<16x128xf32>
    %87 = arith.mulf %76, %86 : vector<16x128xf32>
    %cst_40 = arith.constant 0.254829586 : f32
    %88 = vector.broadcast %cst_40 : f32 to vector<16x128xf32>
    %89 = arith.addf %88, %87 : vector<16x128xf32>
    %90 = arith.mulf %76, %89 : vector<16x128xf32>
    %cst_41 = arith.constant 0.000000e+00 : f32
    %91 = vector.broadcast %cst_41 : f32 to vector<16x128xf32>
    %92 = arith.subf %91, %67 : vector<16x128xf32>
    %93 = arith.mulf %92, %67 : vector<16x128xf32>
    %94 = math.exp %93 : vector<16x128xf32>
    %95 = arith.mulf %90, %94 : vector<16x128xf32>
    %cst_42 = arith.constant 1.000000e+00 : f32
    %96 = vector.broadcast %cst_42 : f32 to vector<16x128xf32>
    %97 = arith.subf %96, %95 : vector<16x128xf32>
    %98 = arith.mulf %66, %97 : vector<16x128xf32>
    %cst_43 = arith.constant 1.000000e+00 : f32
    %99 = vector.broadcast %cst_43 : f32 to vector<16x128xf32>
    %100 = arith.addf %99, %98 : vector<16x128xf32>
    %101 = arith.mulf %59, %100 : vector<16x128xf32>
    %102 = arith.truncf %101 : vector<16x128xf32> to vector<16x128xbf16>
    %c1 = arith.constant 1 : index
    %c0_44 = arith.constant 0 : index
    %c0_45 = arith.constant 0 : index
    %103 = vector.load %arg4[%c1, %c0_44, %c0_45] : memref<3x128x128xbf16, #tpu.memory_space<vmem>>, vector<1x128x128xbf16>
    %104 = vector.shape_cast %103 : vector<1x128x128xbf16> to vector<128x128xbf16>
    %cst_46 = arith.constant dense<0.000000e+00> : vector<16x128xf32>
    %105 = tpu.matmul %102, %104, %cst_46 {dimension_numbers = #tpu.dot_dimension_numbers<[1], [0], [0], [1], [0, 0, 1, 1], [], []>} : vector<16x128xbf16>, vector<128x128xbf16>, vector<16x128xf32> -> vector<16x128xf32>
    %c1_47 = arith.constant 1 : index
    %c0_48 = arith.constant 0 : index
    %c0_49 = arith.constant 0 : index
    %106 = vector.load %arg5[%c1_47, %c0_48, %c0_49] : memref<3x1x128xf32, #tpu.memory_space<vmem>>, vector<1x1x128xf32>
    %107 = vector.shape_cast %106 : vector<1x1x128xf32> to vector<1x128xf32>
    %108 = vector.broadcast %107 : vector<1x128xf32> to vector<16x128xf32>
    %109 = arith.addf %105, %108 : vector<16x128xf32>
    %cst_50 = arith.constant 5.000000e-01 : f32
    %110 = vector.broadcast %cst_50 : f32 to vector<16x128xf32>
    %111 = arith.mulf %110, %109 : vector<16x128xf32>
    %cst_51 = arith.constant 0.707106769 : f32
    %112 = vector.broadcast %cst_51 : f32 to vector<16x128xf32>
    %113 = arith.mulf %109, %112 : vector<16x128xf32>
    %cst_52 = arith.constant 0.000000e+00 : f32
    %114 = vector.broadcast %cst_52 : f32 to vector<16x128xf32>
    %115 = arith.cmpf olt, %113, %114 : vector<16x128xf32>
    %cst_53 = arith.constant -1.000000e+00 : f32
    %cst_54 = arith.constant 1.000000e+00 : f32
    %116 = vector.broadcast %cst_53 : f32 to vector<16x128xf32>
    %117 = vector.broadcast %cst_54 : f32 to vector<16x128xf32>
    %118 = arith.select %115, %116, %117 : vector<16x128xi1>, vector<16x128xf32>
    %119 = math.absf %113 : vector<16x128xf32>
    %cst_55 = arith.constant 0.327591091 : f32
    %120 = vector.broadcast %cst_55 : f32 to vector<16x128xf32>
    %121 = arith.mulf %120, %119 : vector<16x128xf32>
    %cst_56 = arith.constant 1.000000e+00 : f32
    %122 = vector.broadcast %cst_56 : f32 to vector<16x128xf32>
    %123 = arith.addf %122, %121 : vector<16x128xf32>
    %124 = tpu.reciprocal %123 {approx = true} : vector<16x128xf32> -> vector<16x128xf32>
    %125 = arith.mulf %123, %124 : vector<16x128xf32>
    %cst_57 = arith.constant 2.000000e+00 : f32
    %126 = vector.broadcast %cst_57 : f32 to vector<16x128xf32>
    %127 = arith.subf %126, %125 : vector<16x128xf32>
    %128 = arith.mulf %124, %127 : vector<16x128xf32>
    %cst_58 = arith.constant 1.06140542 : f32
    %129 = vector.broadcast %cst_58 : f32 to vector<16x128xf32>
    %130 = arith.mulf %128, %129 : vector<16x128xf32>
    %cst_59 = arith.constant -1.45315206 : f32
    %131 = vector.broadcast %cst_59 : f32 to vector<16x128xf32>
    %132 = arith.addf %131, %130 : vector<16x128xf32>
    %133 = arith.mulf %128, %132 : vector<16x128xf32>
    %cst_60 = arith.constant 1.42141378 : f32
    %134 = vector.broadcast %cst_60 : f32 to vector<16x128xf32>
    %135 = arith.addf %134, %133 : vector<16x128xf32>
    %136 = arith.mulf %128, %135 : vector<16x128xf32>
    %cst_61 = arith.constant -0.284496725 : f32
    %137 = vector.broadcast %cst_61 : f32 to vector<16x128xf32>
    %138 = arith.addf %137, %136 : vector<16x128xf32>
    %139 = arith.mulf %128, %138 : vector<16x128xf32>
    %cst_62 = arith.constant 0.254829586 : f32
    %140 = vector.broadcast %cst_62 : f32 to vector<16x128xf32>
    %141 = arith.addf %140, %139 : vector<16x128xf32>
    %142 = arith.mulf %128, %141 : vector<16x128xf32>
    %cst_63 = arith.constant 0.000000e+00 : f32
    %143 = vector.broadcast %cst_63 : f32 to vector<16x128xf32>
    %144 = arith.subf %143, %119 : vector<16x128xf32>
    %145 = arith.mulf %144, %119 : vector<16x128xf32>
    %146 = math.exp %145 : vector<16x128xf32>
    %147 = arith.mulf %142, %146 : vector<16x128xf32>
    %cst_64 = arith.constant 1.000000e+00 : f32
    %148 = vector.broadcast %cst_64 : f32 to vector<16x128xf32>
    %149 = arith.subf %148, %147 : vector<16x128xf32>
    %150 = arith.mulf %118, %149 : vector<16x128xf32>
    %cst_65 = arith.constant 1.000000e+00 : f32
    %151 = vector.broadcast %cst_65 : f32 to vector<16x128xf32>
    %152 = arith.addf %151, %150 : vector<16x128xf32>
    %153 = arith.mulf %111, %152 : vector<16x128xf32>
    %154 = arith.truncf %153 : vector<16x128xf32> to vector<16x128xbf16>
    %c2 = arith.constant 2 : index
    %c0_66 = arith.constant 0 : index
    %c0_67 = arith.constant 0 : index
    %155 = vector.load %arg4[%c2, %c0_66, %c0_67] : memref<3x128x128xbf16, #tpu.memory_space<vmem>>, vector<1x128x128xbf16>
    %156 = vector.shape_cast %155 : vector<1x128x128xbf16> to vector<128x128xbf16>
    %cst_68 = arith.constant dense<0.000000e+00> : vector<16x128xf32>
    %157 = tpu.matmul %154, %156, %cst_68 {dimension_numbers = #tpu.dot_dimension_numbers<[1], [0], [0], [1], [0, 0, 1, 1], [], []>} : vector<16x128xbf16>, vector<128x128xbf16>, vector<16x128xf32> -> vector<16x128xf32>
    %c2_69 = arith.constant 2 : index
    %c0_70 = arith.constant 0 : index
    %c0_71 = arith.constant 0 : index
    %158 = vector.load %arg5[%c2_69, %c0_70, %c0_71] : memref<3x1x128xf32, #tpu.memory_space<vmem>>, vector<1x1x128xf32>
    %159 = vector.shape_cast %158 : vector<1x1x128xf32> to vector<1x128xf32>
    %160 = vector.broadcast %159 : vector<1x128xf32> to vector<16x128xf32>
    %161 = arith.addf %157, %160 : vector<16x128xf32>
    %cst_72 = arith.constant 5.000000e-01 : f32
    %162 = vector.broadcast %cst_72 : f32 to vector<16x128xf32>
    %163 = arith.mulf %162, %161 : vector<16x128xf32>
    %cst_73 = arith.constant 0.707106769 : f32
    %164 = vector.broadcast %cst_73 : f32 to vector<16x128xf32>
    %165 = arith.mulf %161, %164 : vector<16x128xf32>
    %cst_74 = arith.constant 0.000000e+00 : f32
    %166 = vector.broadcast %cst_74 : f32 to vector<16x128xf32>
    %167 = arith.cmpf olt, %165, %166 : vector<16x128xf32>
    %cst_75 = arith.constant -1.000000e+00 : f32
    %cst_76 = arith.constant 1.000000e+00 : f32
    %168 = vector.broadcast %cst_75 : f32 to vector<16x128xf32>
    %169 = vector.broadcast %cst_76 : f32 to vector<16x128xf32>
    %170 = arith.select %167, %168, %169 : vector<16x128xi1>, vector<16x128xf32>
    %171 = math.absf %165 : vector<16x128xf32>
    %cst_77 = arith.constant 0.327591091 : f32
    %172 = vector.broadcast %cst_77 : f32 to vector<16x128xf32>
    %173 = arith.mulf %172, %171 : vector<16x128xf32>
    %cst_78 = arith.constant 1.000000e+00 : f32
    %174 = vector.broadcast %cst_78 : f32 to vector<16x128xf32>
    %175 = arith.addf %174, %173 : vector<16x128xf32>
    %176 = tpu.reciprocal %175 {approx = true} : vector<16x128xf32> -> vector<16x128xf32>
    %177 = arith.mulf %175, %176 : vector<16x128xf32>
    %cst_79 = arith.constant 2.000000e+00 : f32
    %178 = vector.broadcast %cst_79 : f32 to vector<16x128xf32>
    %179 = arith.subf %178, %177 : vector<16x128xf32>
    %180 = arith.mulf %176, %179 : vector<16x128xf32>
    %cst_80 = arith.constant 1.06140542 : f32
    %181 = vector.broadcast %cst_80 : f32 to vector<16x128xf32>
    %182 = arith.mulf %180, %181 : vector<16x128xf32>
    %cst_81 = arith.constant -1.45315206 : f32
    %183 = vector.broadcast %cst_81 : f32 to vector<16x128xf32>
    %184 = arith.addf %183, %182 : vector<16x128xf32>
    %185 = arith.mulf %180, %184 : vector<16x128xf32>
    %cst_82 = arith.constant 1.42141378 : f32
    %186 = vector.broadcast %cst_82 : f32 to vector<16x128xf32>
    %187 = arith.addf %186, %185 : vector<16x128xf32>
    %188 = arith.mulf %180, %187 : vector<16x128xf32>
    %cst_83 = arith.constant -0.284496725 : f32
    %189 = vector.broadcast %cst_83 : f32 to vector<16x128xf32>
    %190 = arith.addf %189, %188 : vector<16x128xf32>
    %191 = arith.mulf %180, %190 : vector<16x128xf32>
    %cst_84 = arith.constant 0.254829586 : f32
    %192 = vector.broadcast %cst_84 : f32 to vector<16x128xf32>
    %193 = arith.addf %192, %191 : vector<16x128xf32>
    %194 = arith.mulf %180, %193 : vector<16x128xf32>
    %cst_85 = arith.constant 0.000000e+00 : f32
    %195 = vector.broadcast %cst_85 : f32 to vector<16x128xf32>
    %196 = arith.subf %195, %171 : vector<16x128xf32>
    %197 = arith.mulf %196, %171 : vector<16x128xf32>
    %198 = math.exp %197 : vector<16x128xf32>
    %199 = arith.mulf %194, %198 : vector<16x128xf32>
    %cst_86 = arith.constant 1.000000e+00 : f32
    %200 = vector.broadcast %cst_86 : f32 to vector<16x128xf32>
    %201 = arith.subf %200, %199 : vector<16x128xf32>
    %202 = arith.mulf %170, %201 : vector<16x128xf32>
    %cst_87 = arith.constant 1.000000e+00 : f32
    %203 = vector.broadcast %cst_87 : f32 to vector<16x128xf32>
    %204 = arith.addf %203, %202 : vector<16x128xf32>
    %205 = arith.mulf %163, %204 : vector<16x128xf32>
    %206 = arith.truncf %205 : vector<16x128xf32> to vector<16x128xbf16>
    %c0_88 = arith.constant 0 : index
    %c0_89 = arith.constant 0 : index
    %207 = vector.load %arg6[%c0_88, %c0_89] : memref<128x128xbf16, #tpu.memory_space<vmem>>, vector<128x128xbf16>
    %cst_90 = arith.constant dense<0.000000e+00> : vector<16x128xf32>
    %208 = tpu.matmul %206, %207, %cst_90 {dimension_numbers = #tpu.dot_dimension_numbers<[1], [0], [0], [1], [0, 0, 1, 1], [], []>} : vector<16x128xbf16>, vector<128x128xbf16>, vector<16x128xf32> -> vector<16x128xf32>
    %c0_91 = arith.constant 0 : index
    %c0_92 = arith.constant 0 : index
    %209 = vector.load %arg7[%c0_91, %c0_92] : memref<1x128xf32, #tpu.memory_space<vmem>>, vector<1x128xf32>
    %210 = vector.broadcast %209 : vector<1x128xf32> to vector<16x128xf32>
    %211 = arith.addf %208, %210 : vector<16x128xf32>
    %cst_93 = arith.constant 5.000000e-01 : f32
    %212 = vector.broadcast %cst_93 : f32 to vector<16x128xf32>
    %213 = arith.mulf %212, %211 : vector<16x128xf32>
    %cst_94 = arith.constant 0.707106769 : f32
    %214 = vector.broadcast %cst_94 : f32 to vector<16x128xf32>
    %215 = arith.mulf %211, %214 : vector<16x128xf32>
    %cst_95 = arith.constant 0.000000e+00 : f32
    %216 = vector.broadcast %cst_95 : f32 to vector<16x128xf32>
    %217 = arith.cmpf olt, %215, %216 : vector<16x128xf32>
    %cst_96 = arith.constant -1.000000e+00 : f32
    %cst_97 = arith.constant 1.000000e+00 : f32
    %218 = vector.broadcast %cst_96 : f32 to vector<16x128xf32>
    %219 = vector.broadcast %cst_97 : f32 to vector<16x128xf32>
    %220 = arith.select %217, %218, %219 : vector<16x128xi1>, vector<16x128xf32>
    %221 = math.absf %215 : vector<16x128xf32>
    %cst_98 = arith.constant 0.327591091 : f32
    %222 = vector.broadcast %cst_98 : f32 to vector<16x128xf32>
    %223 = arith.mulf %222, %221 : vector<16x128xf32>
    %cst_99 = arith.constant 1.000000e+00 : f32
    %224 = vector.broadcast %cst_99 : f32 to vector<16x128xf32>
    %225 = arith.addf %224, %223 : vector<16x128xf32>
    %226 = tpu.reciprocal %225 {approx = true} : vector<16x128xf32> -> vector<16x128xf32>
    %227 = arith.mulf %225, %226 : vector<16x128xf32>
    %cst_100 = arith.constant 2.000000e+00 : f32
    %228 = vector.broadcast %cst_100 : f32 to vector<16x128xf32>
    %229 = arith.subf %228, %227 : vector<16x128xf32>
    %230 = arith.mulf %226, %229 : vector<16x128xf32>
    %cst_101 = arith.constant 1.06140542 : f32
    %231 = vector.broadcast %cst_101 : f32 to vector<16x128xf32>
    %232 = arith.mulf %230, %231 : vector<16x128xf32>
    %cst_102 = arith.constant -1.45315206 : f32
    %233 = vector.broadcast %cst_102 : f32 to vector<16x128xf32>
    %234 = arith.addf %233, %232 : vector<16x128xf32>
    %235 = arith.mulf %230, %234 : vector<16x128xf32>
    %cst_103 = arith.constant 1.42141378 : f32
    %236 = vector.broadcast %cst_103 : f32 to vector<16x128xf32>
    %237 = arith.addf %236, %235 : vector<16x128xf32>
    %238 = arith.mulf %230, %237 : vector<16x128xf32>
    %cst_104 = arith.constant -0.284496725 : f32
    %239 = vector.broadcast %cst_104 : f32 to vector<16x128xf32>
    %240 = arith.addf %239, %238 : vector<16x128xf32>
    %241 = arith.mulf %230, %240 : vector<16x128xf32>
    %cst_105 = arith.constant 0.254829586 : f32
    %242 = vector.broadcast %cst_105 : f32 to vector<16x128xf32>
    %243 = arith.addf %242, %241 : vector<16x128xf32>
    %244 = arith.mulf %230, %243 : vector<16x128xf32>
    %cst_106 = arith.constant 0.000000e+00 : f32
    %245 = vector.broadcast %cst_106 : f32 to vector<16x128xf32>
    %246 = arith.subf %245, %221 : vector<16x128xf32>
    %247 = arith.mulf %246, %221 : vector<16x128xf32>
    %248 = math.exp %247 : vector<16x128xf32>
    %249 = arith.mulf %244, %248 : vector<16x128xf32>
    %cst_107 = arith.constant 1.000000e+00 : f32
    %250 = vector.broadcast %cst_107 : f32 to vector<16x128xf32>
    %251 = arith.subf %250, %249 : vector<16x128xf32>
    %252 = arith.mulf %220, %251 : vector<16x128xf32>
    %cst_108 = arith.constant 1.000000e+00 : f32
    %253 = vector.broadcast %cst_108 : f32 to vector<16x128xf32>
    %254 = arith.addf %253, %252 : vector<16x128xf32>
    %255 = arith.mulf %213, %254 : vector<16x128xf32>
    %c0_109 = arith.constant 0 : index
    %c0_110 = arith.constant 0 : index
    %256 = vector.load %arg8[%c0_109, %c0_110] : memref<16x128xf32, #tpu.memory_space<vmem>>, vector<16x128xf32>
    tpu.vector_store %arg8[%c0_109, %c0_110], %255 {strides = array<i32>} : memref<16x128xf32, #tpu.memory_space<vmem>>, vector<16x128xf32>,
    return
  }
  func.func @transform_0(%arg0: i32) -> (i32, i32) {
    %c0_i32 = arith.constant 0 : i32
    %c0_i32_0 = arith.constant 0 : i32
    return %arg0, %c0_i32 : i32, i32
  }
  func.func @transform_1(%arg0: i32) -> (i32, i32) {
    %c0_i32 = arith.constant 0 : i32
    %c0_i32_0 = arith.constant 0 : i32
    %c0_i32_1 = arith.constant 0 : i32
    return %c0_i32, %c0_i32_0 : i32, i32
  }
  func.func @transform_2(%arg0: i32) -> (i32, i32) {
    %c0_i32 = arith.constant 0 : i32
    %c0_i32_0 = arith.constant 0 : i32
    %c0_i32_1 = arith.constant 0 : i32
    return %c0_i32, %c0_i32_0 : i32, i32
  }
  func.func @transform_3(%arg0: i32) -> (i32, i32, i32) {
    %c0_i32 = arith.constant 0 : i32
    %c0_i32_0 = arith.constant 0 : i32
    %c0_i32_1 = arith.constant 0 : i32
    %c0_i32_2 = arith.constant 0 : i32
    return %c0_i32, %c0_i32_0, %c0_i32_1 : i32, i32, i32
  }
  func.func @transform_4(%arg0: i32) -> (i32, i32, i32) {
    %c0_i32 = arith.constant 0 : i32
    %c0_i32_0 = arith.constant 0 : i32
    %c0_i32_1 = arith.constant 0 : i32
    %c0_i32_2 = arith.constant 0 : i32
    return %c0_i32, %c0_i32_0, %c0_i32_1 : i32, i32, i32
  }
  func.func @transform_5(%arg0: i32) -> (i32, i32) {
    %c0_i32 = arith.constant 0 : i32
    %c0_i32_0 = arith.constant 0 : i32
    %c0_i32_1 = arith.constant 0 : i32
    return %c0_i32, %c0_i32_0 : i32, i32
  }
  func.func @transform_6(%arg0: i32) -> (i32, i32) {
    %c0_i32 = arith.constant 0 : i32
    %c0_i32_0 = arith.constant 0 : i32
    %c0_i32_1 = arith.constant 0 : i32
    return %c0_i32, %c0_i32_0 : i32, i32
  }
  func.func @transform_7(%arg0: i32) -> (i32, i32) {
    %c0_i32 = arith.constant 0 : i32
    %c0_i32_0 = arith.constant 0 : i32
    return %arg0, %c0_i32 : i32, i32
  }
}

</mosaic_0001>

<llo_original>
// kernel: tpu_custom_call.1
$region0: #{tpu_custom_call.1}
  #allocation0 [shape = 'u32[]', space=smem, size = 0x4, offset = 0x4, fixed_abs, tag = 'smem constant byte address 0x4 - core index']
  #allocation1 [shape = 'u32[72,128]{1,0:T(1,128)}', space=vmem, size = 0x9000, scoped, tag = 'internal scratch']
  %s0 = inlined_call_operand.hbm [shape: bf16[16,128], index: 0, kind: input, shape index: {}]
  %s1 = inlined_call_operand.hbm [shape: bf16[128,128], index: 1, kind: input, shape index: {}]
  %s2 = inlined_call_operand.hbm [shape: f32[1,128], index: 2, kind: input, shape index: {}]
  %s3 = inlined_call_operand.hbm [shape: bf16[3,128,128], index: 3, kind: input, shape index: {}]
  %s4 = inlined_call_operand.vmem [shape: f32[3,1,128], index: 4, kind: input, shape index: {}]
  %s5 = inlined_call_operand.hbm [shape: bf16[128,128], index: 5, kind: input, shape index: {}]
  %s6 = inlined_call_operand.vmem [shape: f32[1,128], index: 6, kind: input, shape index: {}]
  %s7 = inlined_call_operand.hbm [shape: f32[16,128], index: 7, kind: output, shape index: {}]
  %s8 = sld [smem:[#allocation0]]
  $region58: #{tpu_custom_call.1} parent=0
    _
  %s10 = ssub.s32 1, %s8
  %s11 = scalar_select 0, %s10, %s8
  $region1: #{tpu_custom_call.1} parent=0
    #allocation2 [shape = 'u8[4096]{0}', space=vmem, size = 0x1000, scoped, tag = 'input window, operand 0, single buffered']
    #allocation3 [shape = 's32[1]{0}', space=sflag, size = 0x4, scoped, tag = 'scoped memory for tpu_custom_call.1']
    #allocation4 [shape = 's32[1]{0}', space=sflag, size = 0x4, scoped, tag = 'scoped memory for tpu_custom_call.1']
    #allocation5 [shape = 'u8[32768]{0}', space=vmem, size = 0x8000, scoped, tag = 'input window, operand 1, single buffered']
    #allocation6 [shape = 's32[1]{0}', space=sflag, size = 0x4, scoped, tag = 'scoped memory for tpu_custom_call.1']
    #allocation7 [shape = 'u8[512]{0}', space=vmem, size = 0x400, scoped, tag = 'input window, operand 2, single buffered']
    #allocation8 [shape = 'u8[98304]{0}', space=vmem, size = 0x18000, scoped, tag = 'input window, operand 3, single buffered']
    #allocation9 [shape = 's32[1]{0}', space=sflag, size = 0x4, scoped, tag = 'scoped memory for tpu_custom_call.1']
    #allocation10 [shape = 'u8[32768]{0}', space=vmem, size = 0x8000, scoped, tag = 'input window, operand 5, single buffered']
    #allocation11 [shape = 'u8[8192]{0}', space=vmem, size = 0x2000, scoped, tag = 'output window, operand 0, single buffered']
    %12 = vsyncpa [#allocation3], 0
    %13 = vsyncpa [#allocation6], 0
    %14 = vsyncpa [#allocation9], 0
    %15 = vsyncpa [#allocation4], 0
    // Predicated region
    $region2: #{tpu_custom_call.1} parent=1 // pred_check
      _
    $region3: #{tpu_custom_call.1} parent=1 // pred_check_branch
      %17 = sbr.rel (0) target = $region5
    $region4: #{tpu_custom_call.1} parent=1 // pred_region
      %19 = vsyncadd [#allocation3], 0
      %s20 = sshll.u32 %s0, 4
      %s21 = int_to_ptr.hbm [resolvable:$true] %s20
      %s22 = sshll.u32 [#allocation2], 4
      %s23 = int_to_ptr.vmem [resolvable:$true] %s22
      %28 = dma.hbm_to_vmem [thread:$0]  %s21, 128, %s23, [#allocation3], 64, 64, 4
    $region5: #{tpu_custom_call.1} parent=1 // pred_fallthru
      _
    // Predicated region
    $region6: #{tpu_custom_call.1} parent=1 // pred_check
      _
    $region7: #{tpu_custom_call.1} parent=1 // pred_check_branch
      %30 = sbr.rel (0) target = $region9
    $region8: #{tpu_custom_call.1} parent=1 // pred_region
      %32 = vsyncadd [#allocation6], 0
      %s33 = sshll.u32 %s1, 4
      %s34 = int_to_ptr.hbm [resolvable:$true] %s33
      %s35 = sshll.u32 [#allocation5], 4
      %s36 = int_to_ptr.vmem [resolvable:$true] %s35
      %41 = dma.hbm_to_vmem [thread:$0]  %s34, 1024, %s36, [#allocation6], 64, 64, 4
    $region9: #{tpu_custom_call.1} parent=1 // pred_fallthru
      _
    // Predicated region
    $region10: #{tpu_custom_call.1} parent=1 // pred_check
      _
    $region11: #{tpu_custom_call.1} parent=1 // pred_check_branch
      %43 = sbr.rel (0) target = $region13
    $region12: #{tpu_custom_call.1} parent=1 // pred_region
      %45 = vsyncadd [#allocation6], 0
      %s47 = sshll.u32 %s2, 4
      %s48 = int_to_ptr.hbm [resolvable:$true] %s47
      %s49 = sshll.u32 [#allocation7], 4
      %s50 = int_to_ptr.vmem [resolvable:$true] %s49
      %52 = dma.hbm_to_vmem [thread:$0]  %s48, 16, %s50, [#allocation6]
    $region13: #{tpu_custom_call.1} parent=1 // pred_fallthru
      _
    // Predicated region
    $region14: #{tpu_custom_call.1} parent=1 // pred_check
      _
    $region15: #{tpu_custom_call.1} parent=1 // pred_check_branch
      %54 = sbr.rel (0) target = $region17
    $region16: #{tpu_custom_call.1} parent=1 // pred_region
      %56 = vsyncadd [#allocation9], 0
      %s57 = sshll.u32 %s3, 4
      %s58 = int_to_ptr.hbm [resolvable:$true] %s57
      %s59 = sshll.u32 [#allocation8], 4
      %s60 = int_to_ptr.vmem [resolvable:$true] %s59
      %65 = dma.hbm_to_vmem [thread:$0]  %s58, 3072, %s60, [#allocation9], 64, 64, 4
    $region17: #{tpu_custom_call.1} parent=1 // pred_fallthru
      _
    // Predicated region
    $region18: #{tpu_custom_call.1} parent=1 // pred_check
      _
    $region19: #{tpu_custom_call.1} parent=1 // pred_check_branch
      %67 = sbr.rel (0) target = $region21
    $region20: #{tpu_custom_call.1} parent=1 // pred_region
      _
    $region21: #{tpu_custom_call.1} parent=1 // pred_fallthru
      _
    // Predicated region
    $region22: #{tpu_custom_call.1} parent=1 // pred_check
      _
    $region23: #{tpu_custom_call.1} parent=1 // pred_check_branch
      %69 = sbr.rel (0) target = $region25
    $region24: #{tpu_custom_call.1} parent=1 // pred_region
      %71 = vsyncadd [#allocation9], 0
      %s72 = sshll.u32 %s5, 4
      %s73 = int_to_ptr.hbm [resolvable:$true] %s72
      %s74 = sshll.u32 [#allocation10], 4
      %s75 = int_to_ptr.vmem [resolvable:$true] %s74
      %80 = dma.hbm_to_vmem [thread:$0]  %s73, 1024, %s75, [#allocation9], 64, 64, 4
    $region25: #{tpu_custom_call.1} parent=1 // pred_fallthru
      _
    // Predicated region
    $region26: #{tpu_custom_call.1} parent=1 // pred_check
      _
    $region27: #{tpu_custom_call.1} parent=1 // pred_check_branch
      %82 = sbr.rel (0) target = $region29
    $region28: #{tpu_custom_call.1} parent=1 // pred_region
      _
    $region29: #{tpu_custom_call.1} parent=1 // pred_fallthru
      _
    // Predicated region
    $region30: #{tpu_custom_call.1} parent=1 // pred_check
      _
    $region31: #{tpu_custom_call.1} parent=1 // pred_check_branch
      %84 = sbr.rel (0) target = $region33
    $region32: #{tpu_custom_call.1} parent=1 // pred_region
      %86 = dma.done [#allocation3], 128
    $region33: #{tpu_custom_call.1} parent=1 // pred_fallthru
      _
    // Predicated region
    $region34: #{tpu_custom_call.1} parent=1 // pred_check
      _
    $region35: #{tpu_custom_call.1} parent=1 // pred_check_branch
      %88 = sbr.rel (0) target = $region37
    $region36: #{tpu_custom_call.1} parent=1 // pred_region
      %90 = dma.done [#allocation6], 1024
    $region37: #{tpu_custom_call.1} parent=1 // pred_fallthru
      _
    // Predicated region
    $region38: #{tpu_custom_call.1} parent=1 // pred_check
      _
    $region39: #{tpu_custom_call.1} parent=1 // pred_check_branch
      %92 = sbr.rel (0) target = $region41
    $region40: #{tpu_custom_call.1} parent=1 // pred_region
      %94 = dma.done [#allocation6], 16
    $region41: #{tpu_custom_call.1} parent=1 // pred_fallthru
      _
    // Predicated region
    $region42: #{tpu_custom_call.1} parent=1 // pred_check
      _
    $region43: #{tpu_custom_call.1} parent=1 // pred_check_branch
      %96 = sbr.rel (0) target = $region45
    $region44: #{tpu_custom_call.1} parent=1 // pred_region
      %98 = dma.done [#allocation9], 3072
    $region45: #{tpu_custom_call.1} parent=1 // pred_fallthru
      _
    // Predicated region
    $region46: #{tpu_custom_call.1} parent=1 // pred_check
      _
    $region47: #{tpu_custom_call.1} parent=1 // pred_check_branch
      %100 = sbr.rel (0) target = $region49
    $region48: #{tpu_custom_call.1} parent=1 // pred_region
      %102 = dma.done [#allocation9], 1024
    $region49: #{tpu_custom_call.1} parent=1 // pred_fallthru
      _
    %v103 = vld [vmem:[#allocation2] sm:$0xf]
    %v104 = vld [vmem:[#allocation2 + $0x4] sm:$0xf]
    %v105 = vld [vmem:[#allocation5] sm:$0xf]
    %v106 = vld [vmem:[#allocation5 + $0x4] sm:$0xf]
    %v107 = vld [vmem:[#allocation5 + $0x8] sm:$0xf]
    %v108 = vld [vmem:[#allocation5 + $0xc] sm:$0xf]
    %v109 = vld [vmem:[#allocation5 + $0x10] sm:$0xf]
    %v110 = vld [vmem:[#allocation5 + $0x14] sm:$0xf]
    %v111 = vld [vmem:[#allocation5 + $0x18] sm:$0xf]
    %v112 = vld [vmem:[#allocation5 + $0x1c] sm:$0xf]
    %v113 = vld [vmem:[#allocation5 + $0x20] sm:$0xf]
    %v114 = vld [vmem:[#allocation5 + $0x24] sm:$0xf]
    %v115 = vld [vmem:[#allocation5 + $0x28] sm:$0xf]
    %v116 = vld [vmem:[#allocation5 + $0x2c] sm:$0xf]
    %v117 = vld [vmem:[#allocation5 + $0x30] sm:$0xf]
    %v118 = vld [vmem:[#allocation5 + $0x34] sm:$0xf]
    %v119 = vld [vmem:[#allocation5 + $0x38] sm:$0xf]
    %v120 = vld [vmem:[#allocation5 + $0x3c] sm:$0xf]
    %v121 = vld [vmem:[#allocation7] sm:$0x1]
    %v123 = vperm.slane %v121, 0
    %v127 = vunpack.c.l.b16 %v103
    %v128 = vunpack.c.l.b16 %v104
    %v129 = vpack.c.b16 %v128, %v127
    %v147 = vunpack.c.l.b16 %v105
    %v148 = vunpack.c.l.b16 %v106
    %v149 = vunpack.c.l.b16 %v107
    %v150 = vunpack.c.l.b16 %v108
    %v151 = vunpack.c.l.b16 %v109
    %v152 = vunpack.c.l.b16 %v110
    %v153 = vunpack.c.l.b16 %v111
    %v154 = vunpack.c.l.b16 %v112
    %v155 = vunpack.c.l.b16 %v113
    %v156 = vunpack.c.l.b16 %v114
    %v157 = vunpack.c.l.b16 %v115
    %v158 = vunpack.c.l.b16 %v116
    %v159 = vunpack.c.l.b16 %v117
    %v160 = vunpack.c.l.b16 %v118
    %v161 = vunpack.c.l.b16 %v119
    %v162 = vunpack.c.l.b16 %v120
    %v163 = vpack.c.b16 %v148, %v147
    %v164 = vpack.c.b16 %v150, %v149
    %v165 = vpack.c.b16 %v152, %v151
    %v166 = vpack.c.b16 %v154, %v153
    %v167 = vpack.c.b16 %v156, %v155
    %v168 = vpack.c.b16 %v158, %v157
    %v169 = vpack.c.b16 %v160, %v159
    %v170 = vpack.c.b16 %v162, %v161
    %179 = vmatpush.bf16.msra.mxu0 %v170
    %180 = vmatpush.bf16.msra.mxu0 %v169
    %181 = vmatpush.bf16.msra.mxu0 %v168
    %182 = vmatpush.bf16.msra.mxu0 %v167
    %183 = vmatpush.bf16.msra.mxu0 %v166
    %184 = vmatpush.bf16.msra.mxu0 %v165
    %185 = vmatpush.bf16.msra.mxu0 %v164
    %186 = vmatpush.bf16.msra.mxu0 %v163
    %187 = vmatmul.bf16.gmra.mxu0 %v129
    %v188 = vpop.f32.mrf.mxu0
    %v189 = vadd.f32 %v123, %v188
    %v190 = vpop.f32.mrf.mxu0
    %v191 = vadd.f32 %v123, %v190
    %192 = vdwg.mxu0
    %v193 = vmul.f32 %v189, 0.5
    %v194 = vmul.f32 %v191, 0.5
    %v195 = vmul.f32 %v189, 0.70710677
    %v196 = vmul.f32 %v191, 0.70710677
    %vm197 = vcmp.lt.f32.partialorder %v195, 0.0
    %vm198 = vcmp.lt.f32.partialorder %v196, 0.0
    %v199 = vsel %vm197, -1.0, 1.0
    %v200 = vsel %vm198, -1.0, 1.0
    %v201 = vand.u32 2147483647, %v195
    %v202 = vand.u32 2147483647, %v196
    %v203 = vmul.f32 %v201, 0.3275911
    %v204 = vmul.f32 %v202, 0.3275911
    %v205 = vadd.f32 %v203, 1.0
    %v206 = vadd.f32 %v204, 1.0
    %v207 = vrcp.pop %v205
    %v208 = vrcp.pop %v206
    %v209 = vmul.f32 %v205, %v207
    %v210 = vmul.f32 %v206, %v208
    %v211 = vsub.f32 2.0, %v209
    %v212 = vsub.f32 2.0, %v210
    %v213 = vmul.f32 %v207, %v211
    %v214 = vmul.f32 %v208, %v212
    %v215 = vmul.f32 %v213, 1.0614054
    %v216 = vmul.f32 %v214, 1.0614054
    %v217 = vadd.f32 %v215, -1.4531521
    %v218 = vadd.f32 %v216, -1.4531521
    %v219 = vmul.f32 %v213, %v217
    %v220 = vmul.f32 %v214, %v218
    %v221 = vadd.f32 %v219, 1.4214138
    %v222 = vadd.f32 %v220, 1.4214138
    %v223 = vmul.f32 %v213, %v221
    %v224 = vmul.f32 %v214, %v222
    %v225 = vadd.f32 %v223, -0.28449672
    %v226 = vadd.f32 %v224, -0.28449672
    %v227 = vmul.f32 %v213, %v225
    %v228 = vmul.f32 %v214, %v226
    %v229 = vadd.f32 %v227, 0.2548296
    %v230 = vadd.f32 %v228, 0.2548296
    %v231 = vmul.f32 %v213, %v229
    %v232 = vmul.f32 %v214, %v230
    %v233 = vsub.f32 0.0, %v201
    %v234 = vsub.f32 0.0, %v202
    %v235 = vmul.f32 %v233, %v201
    %v236 = vmul.f32 %v234, %v202
    %v237 = vmul.f32 %v235, 1.442695
    %v238 = vpow.pop %v237
    %v239 = vmul.f32 %v236, 1.442695
    %v240 = vpow.pop %v239
    %v241 = vmul.f32 %v231, %v238
    %v242 = vmul.f32 %v232, %v240
    %v243 = vsub.f32 1.0, %v241
    %v244 = vsub.f32 1.0, %v242
    %v245 = vmul.f32 %v199, %v243
    %v246 = vmul.f32 %v200, %v244
    %v247 = vadd.f32 %v245, 1.0
    %v248 = vadd.f32 %v246, 1.0
    %v249 = vmul.f32 %v193, %v247
    %v250 = vmul.f32 %v194, %v248
    %v251 = vpack.c.bf16 %v250, %v249
    %v252 = vld [vmem:[#allocation8] sm:$0xf]
    %v253 = vld [vmem:[#allocation8 + $0x4] sm:$0xf]
    %v254 = vld [vmem:[#allocation8 + $0x8] sm:$0xf]
    %v255 = vld [vmem:[#allocation8 + $0xc] sm:$0xf]
    %v256 = vld [vmem:[#allocation8 + $0x10] sm:$0xf]
    %v257 = vld [vmem:[#allocation8 + $0x14] sm:$0xf]
    %v258 = vld [vmem:[#allocation8 + $0x18] sm:$0xf]
    %v259 = vld [vmem:[#allocation8 + $0x1c] sm:$0xf]
    %v260 = vld [vmem:[#allocation8 + $0x20] sm:$0xf]
    %v261 = vld [vmem:[#allocation8 + $0x24] sm:$0xf]
    %v262 = vld [vmem:[#allocation8 + $0x28] sm:$0xf]
    %v263 = vld [vmem:[#allocation8 + $0x2c] sm:$0xf]
    %v264 = vld [vmem:[#allocation8 + $0x30] sm:$0xf]
    %v265 = vld [vmem:[#allocation8 + $0x34] sm:$0xf]
    %v266 = vld [vmem:[#allocation8 + $0x38] sm:$0xf]
    %v267 = vld [vmem:[#allocation8 + $0x3c] sm:$0xf]
    %v268 = vld [vmem:[%s4] sm:$0x1]
    %v270 = vperm.slane %v268, 0
    %v288 = vunpack.c.l.b16 %v252
    %v289 = vunpack.c.l.b16 %v253
    %v290 = vunpack.c.l.b16 %v254
    %v291 = vunpack.c.l.b16 %v255
    %v292 = vunpack.c.l.b16 %v256
    %v293 = vunpack.c.l.b16 %v257
    %v294 = vunpack.c.l.b16 %v258
    %v295 = vunpack.c.l.b16 %v259
    %v296 = vunpack.c.l.b16 %v260
    %v297 = vunpack.c.l.b16 %v261
    %v298 = vunpack.c.l.b16 %v262
    %v299 = vunpack.c.l.b16 %v263
    %v300 = vunpack.c.l.b16 %v264
    %v301 = vunpack.c.l.b16 %v265
    %v302 = vunpack.c.l.b16 %v266
    %v303 = vunpack.c.l.b16 %v267
    %v304 = vpack.c.b16 %v289, %v288
    %v305 = vpack.c.b16 %v291, %v290
    %v306 = vpack.c.b16 %v293, %v292
    %v307 = vpack.c.b16 %v295, %v294
    %v308 = vpack.c.b16 %v297, %v296
    %v309 = vpack.c.b16 %v299, %v298
    %v310 = vpack.c.b16 %v301, %v300
    %v311 = vpack.c.b16 %v303, %v302
    %320 = vmatpush.bf16.msra.mxu0 %v311
    %321 = vmatpush.bf16.msra.mxu0 %v310
    %322 = vmatpush.bf16.msra.mxu0 %v309
    %323 = vmatpush.bf16.msra.mxu0 %v308
    %324 = vmatpush.bf16.msra.mxu0 %v307
    %325 = vmatpush.bf16.msra.mxu0 %v306
    %326 = vmatpush.bf16.msra.mxu0 %v305
    %327 = vmatpush.bf16.msra.mxu0 %v304
    %328 = vmatmul.bf16.gmra.mxu0 %v251
    %v329 = vpop.f32.mrf.mxu0
    %v330 = vadd.f32 %v270, %v329
    %v331 = vpop.f32.mrf.mxu0
    %v332 = vadd.f32 %v270, %v331
    %333 = vdwg.mxu0
    %v334 = vmul.f32 %v330, 0.5
    %v335 = vmul.f32 %v332, 0.5
    %v336 = vmul.f32 %v330, 0.70710677
    %v337 = vmul.f32 %v332, 0.70710677
    %vm338 = vcmp.lt.f32.partialorder %v336, 0.0
    %vm339 = vcmp.lt.f32.partialorder %v337, 0.0
    %v340 = vsel %vm338, -1.0, 1.0
    %v341 = vsel %vm339, -1.0, 1.0
    %v342 = vand.u32 2147483647, %v336
    %v343 = vand.u32 2147483647, %v337
    %v344 = vmul.f32 %v342, 0.3275911
    %v345 = vmul.f32 %v343, 0.3275911
    %v346 = vadd.f32 %v344, 1.0
    %v347 = vadd.f32 %v345, 1.0
    %v348 = vrcp.pop %v346
    %v349 = vrcp.pop %v347
    %v350 = vmul.f32 %v346, %v348
    %v351 = vmul.f32 %v347, %v349
    %v352 = vsub.f32 2.0, %v350
    %v353 = vsub.f32 2.0, %v351
    %v354 = vmul.f32 %v348, %v352
    %v355 = vmul.f32 %v349, %v353
    %v356 = vmul.f32 %v354, 1.0614054
    %v357 = vmul.f32 %v355, 1.0614054
    %v358 = vadd.f32 %v356, -1.4531521
    %v359 = vadd.f32 %v357, -1.4531521
    %v360 = vmul.f32 %v354, %v358
    %v361 = vmul.f32 %v355, %v359
    %v362 = vadd.f32 %v360, 1.4214138
    %v363 = vadd.f32 %v361, 1.4214138
    %v364 = vmul.f32 %v354, %v362
    %v365 = vmul.f32 %v355, %v363
    %v366 = vadd.f32 %v364, -0.28449672
    %v367 = vadd.f32 %v365, -0.28449672
    %v368 = vmul.f32 %v354, %v366
    %v369 = vmul.f32 %v355, %v367
    %v370 = vadd.f32 %v368, 0.2548296
    %v371 = vadd.f32 %v369, 0.2548296
    %v372 = vmul.f32 %v354, %v370
    %v373 = vmul.f32 %v355, %v371
    %v374 = vsub.f32 0.0, %v342
    %v375 = vsub.f32 0.0, %v343
    %v376 = vmul.f32 %v374, %v342
    %v377 = vmul.f32 %v375, %v343
    %v378 = vmul.f32 %v376, 1.442695
    %v379 = vpow.pop %v378
    %v380 = vmul.f32 %v377, 1.442695
    %v381 = vpow.pop %v380
    %v382 = vmul.f32 %v372, %v379
    %v383 = vmul.f32 %v373, %v381
    %v384 = vsub.f32 1.0, %v382
    %v385 = vsub.f32 1.0, %v383
    %v386 = vmul.f32 %v340, %v384
    %v387 = vmul.f32 %v341, %v385
    %v388 = vadd.f32 %v386, 1.0
    %v389 = vadd.f32 %v387, 1.0
    %v390 = vmul.f32 %v334, %v388
    %v391 = vmul.f32 %v335, %v389
    %v392 = vpack.c.bf16 %v391, %v390
    %s393 = scalar_lea.vmem [#allocation8], 64
    %v394 = vld [vmem:[%s393] sm:$0xf]
    %v395 = vld [vmem:[%s393 + $0x4] sm:$0xf]
    %v396 = vld [vmem:[%s393 + $0x8] sm:$0xf]
    %v397 = vld [vmem:[%s393 + $0xc] sm:$0xf]
    %v398 = vld [vmem:[%s393 + $0x10] sm:$0xf]
    %v399 = vld [vmem:[%s393 + $0x14] sm:$0xf]
    %v400 = vld [vmem:[%s393 + $0x18] sm:$0xf]
    %v401 = vld [vmem:[%s393 + $0x1c] sm:$0xf]
    %v402 = vld [vmem:[%s393 + $0x20] sm:$0xf]
    %v403 = vld [vmem:[%s393 + $0x24] sm:$0xf]
    %v404 = vld [vmem:[%s393 + $0x28] sm:$0xf]
    %v405 = vld [vmem:[%s393 + $0x2c] sm:$0xf]
    %v406 = vld [vmem:[%s393 + $0x30] sm:$0xf]
    %v407 = vld [vmem:[%s393 + $0x34] sm:$0xf]
    %v408 = vld [vmem:[%s393 + $0x38] sm:$0xf]
    %v409 = vld [vmem:[%s393 + $0x3c] sm:$0xf]
    %s410 = scalar_lea.vmem %s4, 1
    %v411 = vld [vmem:[%s410] sm:$0x1]
    %v413 = vperm.slane %v411, 0
    %v431 = vunpack.c.l.b16 %v394
    %v432 = vunpack.c.l.b16 %v395
    %v433 = vunpack.c.l.b16 %v396
    %v434 = vunpack.c.l.b16 %v397
    %v435 = vunpack.c.l.b16 %v398
    %v436 = vunpack.c.l.b16 %v399
    %v437 = vunpack.c.l.b16 %v400
    %v438 = vunpack.c.l.b16 %v401
    %v439 = vunpack.c.l.b16 %v402
    %v440 = vunpack.c.l.b16 %v403
    %v441 = vunpack.c.l.b16 %v404
    %v442 = vunpack.c.l.b16 %v405
    %v443 = vunpack.c.l.b16 %v406
    %v444 = vunpack.c.l.b16 %v407
    %v445 = vunpack.c.l.b16 %v408
    %v446 = vunpack.c.l.b16 %v409
    %v447 = vpack.c.b16 %v432, %v431
    %v448 = vpack.c.b16 %v434, %v433
    %v449 = vpack.c.b16 %v436, %v435
    %v450 = vpack.c.b16 %v438, %v437
    %v451 = vpack.c.b16 %v440, %v439
    %v452 = vpack.c.b16 %v442, %v441
    %v453 = vpack.c.b16 %v444, %v443
    %v454 = vpack.c.b16 %v446, %v445
    %463 = vmatpush.bf16.msra.mxu0 %v454
    %464 = vmatpush.bf16.msra.mxu0 %v453
    %465 = vmatpush.bf16.msra.mxu0 %v452
    %466 = vmatpush.bf16.msra.mxu0 %v451
    %467 = vmatpush.bf16.msra.mxu0 %v450
    %468 = vmatpush.bf16.msra.mxu0 %v449
    %469 = vmatpush.bf16.msra.mxu0 %v448
    %470 = vmatpush.bf16.msra.mxu0 %v447
    %471 = vmatmul.bf16.gmra.mxu0 %v392
    %v472 = vpop.f32.mrf.mxu0
    %v473 = vadd.f32 %v413, %v472
    %v474 = vpop.f32.mrf.mxu0
    %v475 = vadd.f32 %v413, %v474
    %476 = vdwg.mxu0
    %v477 = vmul.f32 %v473, 0.5
    %v478 = vmul.f32 %v475, 0.5
    %v479 = vmul.f32 %v473, 0.70710677
    %v480 = vmul.f32 %v475, 0.70710677
    %vm481 = vcmp.lt.f32.partialorder %v479, 0.0
    %vm482 = vcmp.lt.f32.partialorder %v480, 0.0
    %v483 = vsel %vm481, -1.0, 1.0
    %v484 = vsel %vm482, -1.0, 1.0
    %v485 = vand.u32 2147483647, %v479
    %v486 = vand.u32 2147483647, %v480
    %v487 = vmul.f32 %v485, 0.3275911
    %v488 = vmul.f32 %v486, 0.3275911
    %v489 = vadd.f32 %v487, 1.0
    %v490 = vadd.f32 %v488, 1.0
    %v491 = vrcp.pop %v489
    %v492 = vrcp.pop %v490
    %v493 = vmul.f32 %v489, %v491
    %v494 = vmul.f32 %v490, %v492
    %v495 = vsub.f32 2.0, %v493
    %v496 = vsub.f32 2.0, %v494
    %v497 = vmul.f32 %v491, %v495
    %v498 = vmul.f32 %v492, %v496
    %v499 = vmul.f32 %v497, 1.0614054
    %v500 = vmul.f32 %v498, 1.0614054
    %v501 = vadd.f32 %v499, -1.4531521
    %v502 = vadd.f32 %v500, -1.4531521
    %v503 = vmul.f32 %v497, %v501
    %v504 = vmul.f32 %v498, %v502
    %v505 = vadd.f32 %v503, 1.4214138
    %v506 = vadd.f32 %v504, 1.4214138
    %v507 = vmul.f32 %v497, %v505
    %v508 = vmul.f32 %v498, %v506
    %v509 = vadd.f32 %v507, -0.28449672
    %v510 = vadd.f32 %v508, -0.28449672
    %v511 = vmul.f32 %v497, %v509
    %v512 = vmul.f32 %v498, %v510
    %v513 = vadd.f32 %v511, 0.2548296
    %v514 = vadd.f32 %v512, 0.2548296
    %v515 = vmul.f32 %v497, %v513
    %v516 = vmul.f32 %v498, %v514
    %v517 = vsub.f32 0.0, %v485
    %v518 = vsub.f32 0.0, %v486
    %v519 = vmul.f32 %v517, %v485
    %v520 = vmul.f32 %v518, %v486
    %v521 = vmul.f32 %v519, 1.442695
    %v522 = vpow.pop %v521
    %v523 = vmul.f32 %v520, 1.442695
    %v524 = vpow.pop %v523
    %v525 = vmul.f32 %v515, %v522
    %v526 = vmul.f32 %v516, %v524
    %v527 = vsub.f32 1.0, %v525
    %v528 = vsub.f32 1.0, %v526
    %v529 = vmul.f32 %v483, %v527
    %v530 = vmul.f32 %v484, %v528
    %v531 = vadd.f32 %v529, 1.0
    %v532 = vadd.f32 %v530, 1.0
    %v533 = vmul.f32 %v477, %v531
    %v534 = vmul.f32 %v478, %v532
    %v535 = vpack.c.bf16 %v534, %v533
    %s536 = scalar_lea.vmem [#allocation8], 128
    %v537 = vld [vmem:[%s536] sm:$0xf]
    %v538 = vld [vmem:[%s536 + $0x4] sm:$0xf]
    %v539 = vld [vmem:[%s536 + $0x8] sm:$0xf]
    %v540 = vld [vmem:[%s536 + $0xc] sm:$0xf]
    %v541 = vld [vmem:[%s536 + $0x10] sm:$0xf]
    %v542 = vld [vmem:[%s536 + $0x14] sm:$0xf]
    %v543 = vld [vmem:[%s536 + $0x18] sm:$0xf]
    %v544 = vld [vmem:[%s536 + $0x1c] sm:$0xf]
    %v545 = vld [vmem:[%s536 + $0x20] sm:$0xf]
    %v546 = vld [vmem:[%s536 + $0x24] sm:$0xf]
    %v547 = vld [vmem:[%s536 + $0x28] sm:$0xf]
    %v548 = vld [vmem:[%s536 + $0x2c] sm:$0xf]
    %v549 = vld [vmem:[%s536 + $0x30] sm:$0xf]
    %v550 = vld [vmem:[%s536 + $0x34] sm:$0xf]
    %v551 = vld [vmem:[%s536 + $0x38] sm:$0xf]
    %v552 = vld [vmem:[%s536 + $0x3c] sm:$0xf]
    %s553 = scalar_lea.vmem %s4, 2
    %v554 = vld [vmem:[%s553] sm:$0x1]
    %v556 = vperm.slane %v554, 0
    %v574 = vunpack.c.l.b16 %v537
    %v575 = vunpack.c.l.b16 %v538
    %v576 = vunpack.c.l.b16 %v539
    %v577 = vunpack.c.l.b16 %v540
    %v578 = vunpack.c.l.b16 %v541
    %v579 = vunpack.c.l.b16 %v542
    %v580 = vunpack.c.l.b16 %v543
    %v581 = vunpack.c.l.b16 %v544
    %v582 = vunpack.c.l.b16 %v545
    %v583 = vunpack.c.l.b16 %v546
    %v584 = vunpack.c.l.b16 %v547
    %v585 = vunpack.c.l.b16 %v548
    %v586 = vunpack.c.l.b16 %v549
    %v587 = vunpack.c.l.b16 %v550
    %v588 = vunpack.c.l.b16 %v551
    %v589 = vunpack.c.l.b16 %v552
    %v590 = vpack.c.b16 %v575, %v574
    %v591 = vpack.c.b16 %v577, %v576
    %v592 = vpack.c.b16 %v579, %v578
    %v593 = vpack.c.b16 %v581, %v580
    %v594 = vpack.c.b16 %v583, %v582
    %v595 = vpack.c.b16 %v585, %v584
    %v596 = vpack.c.b16 %v587, %v586
    %v597 = vpack.c.b16 %v589, %v588
    %606 = vmatpush.bf16.msra.mxu0 %v597
    %607 = vmatpush.bf16.msra.mxu0 %v596
    %608 = vmatpush.bf16.msra.mxu0 %v595
    %609 = vmatpush.bf16.msra.mxu0 %v594
    %610 = vmatpush.bf16.msra.mxu0 %v593
    %611 = vmatpush.bf16.msra.mxu0 %v592
    %612 = vmatpush.bf16.msra.mxu0 %v591
    %613 = vmatpush.bf16.msra.mxu0 %v590
    %614 = vmatmul.bf16.gmra.mxu0 %v535
    %v615 = vpop.f32.mrf.mxu0
    %v616 = vadd.f32 %v556, %v615
    %v617 = vpop.f32.mrf.mxu0
    %v618 = vadd.f32 %v556, %v617
    %619 = vdwg.mxu0
    %v620 = vmul.f32 %v616, 0.5
    %v621 = vmul.f32 %v618, 0.5
    %v622 = vmul.f32 %v616, 0.70710677
    %v623 = vmul.f32 %v618, 0.70710677
    %vm624 = vcmp.lt.f32.partialorder %v622, 0.0
    %vm625 = vcmp.lt.f32.partialorder %v623, 0.0
    %v626 = vsel %vm624, -1.0, 1.0
    %v627 = vsel %vm625, -1.0, 1.0
    %v628 = vand.u32 2147483647, %v622
    %v629 = vand.u32 2147483647, %v623
    %v630 = vmul.f32 %v628, 0.3275911
    %v631 = vmul.f32 %v629, 0.3275911
    %v632 = vadd.f32 %v630, 1.0
    %v633 = vadd.f32 %v631, 1.0
    %v634 = vrcp.pop %v632
    %v635 = vrcp.pop %v633
    %v636 = vmul.f32 %v632, %v634
    %v637 = vmul.f32 %v633, %v635
    %v638 = vsub.f32 2.0, %v636
    %v639 = vsub.f32 2.0, %v637
    %v640 = vmul.f32 %v634, %v638
    %v641 = vmul.f32 %v635, %v639
    %v642 = vmul.f32 %v640, 1.0614054
    %v643 = vmul.f32 %v641, 1.0614054
    %v644 = vadd.f32 %v642, -1.4531521
    %v645 = vadd.f32 %v643, -1.4531521
    %v646 = vmul.f32 %v640, %v644
    %v647 = vmul.f32 %v641, %v645
    %v648 = vadd.f32 %v646, 1.4214138
    %v649 = vadd.f32 %v647, 1.4214138
    %v650 = vmul.f32 %v640, %v648
    %v651 = vmul.f32 %v641, %v649
    %v652 = vadd.f32 %v650, -0.28449672
    %v653 = vadd.f32 %v651, -0.28449672
    %v654 = vmul.f32 %v640, %v652
    %v655 = vmul.f32 %v641, %v653
    %v656 = vadd.f32 %v654, 0.2548296
    %v657 = vadd.f32 %v655, 0.2548296
    %v658 = vmul.f32 %v640, %v656
    %v659 = vmul.f32 %v641, %v657
    %v660 = vsub.f32 0.0, %v628
    %v661 = vsub.f32 0.0, %v629
    %v662 = vmul.f32 %v660, %v628
    %v663 = vmul.f32 %v661, %v629
    %v664 = vmul.f32 %v662, 1.442695
    %v665 = vpow.pop %v664
    %v666 = vmul.f32 %v663, 1.442695
    %v667 = vpow.pop %v666
    %v668 = vmul.f32 %v658, %v665
    %v669 = vmul.f32 %v659, %v667
    %v670 = vsub.f32 1.0, %v668
    %v671 = vsub.f32 1.0, %v669
    %v672 = vmul.f32 %v626, %v670
    %v673 = vmul.f32 %v627, %v671
    %v674 = vadd.f32 %v672, 1.0
    %v675 = vadd.f32 %v673, 1.0
    %v676 = vmul.f32 %v620, %v674
    %v677 = vmul.f32 %v621, %v675
    %v678 = vpack.c.bf16 %v677, %v676
    %v679 = vld [vmem:[#allocation10] sm:$0xf]
    %v680 = vld [vmem:[#allocation10 + $0x4] sm:$0xf]
    %v681 = vld [vmem:[#allocation10 + $0x8] sm:$0xf]
    %v682 = vld [vmem:[#allocation10 + $0xc] sm:$0xf]
    %v683 = vld [vmem:[#allocation10 + $0x10] sm:$0xf]
    %v684 = vld [vmem:[#allocation10 + $0x14] sm:$0xf]
    %v685 = vld [vmem:[#allocation10 + $0x18] sm:$0xf]
    %v686 = vld [vmem:[#allocation10 + $0x1c] sm:$0xf]
    %v687 = vld [vmem:[#allocation10 + $0x20] sm:$0xf]
    %v688 = vld [vmem:[#allocation10 + $0x24] sm:$0xf]
    %v689 = vld [vmem:[#allocation10 + $0x28] sm:$0xf]
    %v690 = vld [vmem:[#allocation10 + $0x2c] sm:$0xf]
    %v691 = vld [vmem:[#allocation10 + $0x30] sm:$0xf]
    %v692 = vld [vmem:[#allocation10 + $0x34] sm:$0xf]
    %v693 = vld [vmem:[#allocation10 + $0x38] sm:$0xf]
    %v694 = vld [vmem:[#allocation10 + $0x3c] sm:$0xf]
    %v695 = vld [vmem:[%s6] sm:$0x1]
    %v697 = vperm.slane %v695, 0
    %v715 = vunpack.c.l.b16 %v679
    %v716 = vunpack.c.l.b16 %v680
    %v717 = vunpack.c.l.b16 %v681
    %v718 = vunpack.c.l.b16 %v682
    %v719 = vunpack.c.l.b16 %v683
    %v720 = vunpack.c.l.b16 %v684
    %v721 = vunpack.c.l.b16 %v685
    %v722 = vunpack.c.l.b16 %v686
    %v723 = vunpack.c.l.b16 %v687
    %v724 = vunpack.c.l.b16 %v688
    %v725 = vunpack.c.l.b16 %v689
    %v726 = vunpack.c.l.b16 %v690
    %v727 = vunpack.c.l.b16 %v691
    %v728 = vunpack.c.l.b16 %v692
    %v729 = vunpack.c.l.b16 %v693
    %v730 = vunpack.c.l.b16 %v694
    %v731 = vpack.c.b16 %v716, %v715
    %v732 = vpack.c.b16 %v718, %v717
    %v733 = vpack.c.b16 %v720, %v719
    %v734 = vpack.c.b16 %v722, %v721
    %v735 = vpack.c.b16 %v724, %v723
    %v736 = vpack.c.b16 %v726, %v725
    %v737 = vpack.c.b16 %v728, %v727
    %v738 = vpack.c.b16 %v730, %v729
    %747 = vmatpush.bf16.msra.mxu0 %v738
    %748 = vmatpush.bf16.msra.mxu0 %v737
    %749 = vmatpush.bf16.msra.mxu0 %v736
    %750 = vmatpush.bf16.msra.mxu0 %v735
    %751 = vmatpush.bf16.msra.mxu0 %v734
    %752 = vmatpush.bf16.msra.mxu0 %v733
    %753 = vmatpush.bf16.msra.mxu0 %v732
    %754 = vmatpush.bf16.msra.mxu0 %v731
    %755 = vmatmul.bf16.gmra.mxu0 %v678
    %v756 = vpop.f32.mrf.mxu0
    %v757 = vadd.f32 %v697, %v756
    %v758 = vpop.f32.mrf.mxu0
    %v759 = vadd.f32 %v697, %v758
    %760 = vdwg.mxu0
    %v761 = vmul.f32 %v757, 0.5
    %v762 = vmul.f32 %v759, 0.5
    %v763 = vmul.f32 %v757, 0.70710677
    %v764 = vmul.f32 %v759, 0.70710677
    %vm765 = vcmp.lt.f32.partialorder %v763, 0.0
    %vm766 = vcmp.lt.f32.partialorder %v764, 0.0
    %v767 = vsel %vm765, -1.0, 1.0
    %v768 = vsel %vm766, -1.0, 1.0
    %v769 = vand.u32 2147483647, %v763
    %v770 = vand.u32 2147483647, %v764
    %v771 = vmul.f32 %v769, 0.3275911
    %v772 = vmul.f32 %v770, 0.3275911
    %v773 = vadd.f32 %v771, 1.0
    %v774 = vadd.f32 %v772, 1.0
    %v775 = vrcp.pop %v773
    %v776 = vrcp.pop %v774
    %v777 = vmul.f32 %v773, %v775
    %v778 = vmul.f32 %v774, %v776
    %v779 = vsub.f32 2.0, %v777
    %v780 = vsub.f32 2.0, %v778
    %v781 = vmul.f32 %v775, %v779
    %v782 = vmul.f32 %v776, %v780
    %v783 = vmul.f32 %v781, 1.0614054
    %v784 = vmul.f32 %v782, 1.0614054
    %v785 = vadd.f32 %v783, -1.4531521
    %v786 = vadd.f32 %v784, -1.4531521
    %v787 = vmul.f32 %v781, %v785
    %v788 = vmul.f32 %v782, %v786
    %v789 = vadd.f32 %v787, 1.4214138
    %v790 = vadd.f32 %v788, 1.4214138
    %v791 = vmul.f32 %v781, %v789
    %v792 = vmul.f32 %v782, %v790
    %v793 = vadd.f32 %v791, -0.28449672
    %v794 = vadd.f32 %v792, -0.28449672
    %v795 = vmul.f32 %v781, %v793
    %v796 = vmul.f32 %v782, %v794
    %v797 = vadd.f32 %v795, 0.2548296
    %v798 = vadd.f32 %v796, 0.2548296
    %v799 = vmul.f32 %v781, %v797
    %v800 = vmul.f32 %v782, %v798
    %v801 = vsub.f32 0.0, %v769
    %v802 = vsub.f32 0.0, %v770
    %v803 = vmul.f32 %v801, %v769
    %v804 = vmul.f32 %v802, %v770
    %v805 = vmul.f32 %v803, 1.442695
    %v806 = vpow.pop %v805
    %v807 = vmul.f32 %v804, 1.442695
    %v808 = vpow.pop %v807
    %v809 = vmul.f32 %v799, %v806
    %v810 = vmul.f32 %v800, %v808
    %v811 = vsub.f32 1.0, %v809
    %v812 = vsub.f32 1.0, %v810
    %v813 = vmul.f32 %v767, %v811
    %v814 = vmul.f32 %v768, %v812
    %v815 = vadd.f32 %v813, 1.0
    %v816 = vadd.f32 %v814, 1.0
    %v817 = vmul.f32 %v761, %v815
    %v818 = vmul.f32 %v762, %v816
    %819 = vst [vmem:[#allocation11] sm:$0xff] %v817
    %820 = vst [vmem:[#allocation11 + $0x8] sm:$0xff] %v818
    // Predicated region
    $region50: #{tpu_custom_call.1} parent=1 // pred_check
      _
    $region51: #{tpu_custom_call.1} parent=1 // pred_check_branch
      %822 = sbr.rel (0) target = $region53
    $region52: #{tpu_custom_call.1} parent=1 // pred_region
      %824 = vsyncadd [#allocation4], 0
      %s825 = sshll.u32 [#allocation11], 4
      %s826 = int_to_ptr.vmem [resolvable:$true] %s825
      %s827 = sshll.u32 %s7, 4
      %s828 = int_to_ptr.hbm [resolvable:$true] %s827
      %833 = dma.vmem_to_hbm [thread:$0]  %s826, 256, %s828, [#allocation4], 128, 128, 8
    $region53: #{tpu_custom_call.1} parent=1 // pred_fallthru
      _
    // Predicated region
    $region54: #{tpu_custom_call.1} parent=1 // pred_check
      _
    $region55: #{tpu_custom_call.1} parent=1 // pred_check_branch
      %835 = sbr.rel (0) target = $region57
    $region56: #{tpu_custom_call.1} parent=1 // pred_region
      %837 = dma.done [#allocation4], 256
    $region57: #{tpu_custom_call.1} parent=1 // pred_fallthru
      _
    %838 = vsyncpa [#allocation3], 1
    %839 = vsyncpa [#allocation6], 1
    %840 = vsyncpa [#allocation9], 1
    %841 = vsyncpa [#allocation4], 1

</llo_original>
